<compile_context>
chip_gen: v7x
topology: tpu7x:2x2x1
jax: 0.10.0
libtpu: 0.0.40
codegen_flags: <defaults>
</compile_context>

<pallas_src>
import math
import functools

import jax
import jax.numpy as jnp
from jax.experimental import pallas as pl
from jax.experimental.pallas import tpu as pltpu

_F32 = jnp.float32
_BF16 = jnp.bfloat16


def _layernorm(x, w, b, eps=1e-5):
    mu = jnp.mean(x, axis=-1, keepdims=True)
    c = x - mu
    var = jnp.mean(c * c, axis=-1, keepdims=True)
    return c * jax.lax.rsqrt(var + eps) * w + b


# ---------------------------------------------------------------------------
# 1) Prologue: patch embedding + CLS + positional embedding.  grid = (groups,)
# ---------------------------------------------------------------------------
def embed_kernel(patches_ref, wp_ref, bp_ref, cls_ref, pos_ref, tok_ref, *,
                 num_patches):
    G, T_pad, D = tok_ref.shape
    N = num_patches

    patches = patches_ref[0]                                     # (G*N, CPP) bf16
    emb = jnp.dot(patches, wp_ref[...],
                  preferred_element_type=_F32) + bp_ref[...]     # (G*N, D) f32
    emb = emb.reshape(G, N, D)

    # row 0 = CLS + pos[0]; rows 1..N = patch tokens + pos; rows >= N+1 stay as
    # the zero pad rows of pos.  Two stores, no sublane concatenate.
    row = jax.lax.broadcasted_iota(jnp.int32, (1, T_pad, 1), 1)
    base = pos_ref[...].reshape(1, T_pad, D) + jnp.where(
        row == 0, cls_ref[...].reshape(1, 1, D), jnp.float32(0.0))
    tok_ref[...] = jnp.broadcast_to(base, (G, T_pad, D))
    tok_ref[:, pl.ds(1, N), :] = emb + pos_ref[pl.ds(1, N), :]


# ---------------------------------------------------------------------------
# 2) Layer loop: one transformer block per inner grid step.
#    grid = (groups, layers); token state lives in VMEM scratch carried across
#    the layer axis; only CLS rows are written back at the last layer.
# ---------------------------------------------------------------------------
def layer_kernel(tok_in_ref,
                 ln1w_ref, ln1b_ref, wqkv_ref, bqkv_ref, wproj_ref, bproj_ref,
                 ln2w_ref, ln2b_ref, wm1_ref, bm1_ref, wm2_ref, bm2_ref,
                 cls_out_ref, tok_ref, *, num_heads, valid_tokens, mlp_chunk):
    G, T_pad, D = tok_ref.shape
    GT = G * T_pad
    hd = D // num_heads
    T = valid_tokens

    l = pl.program_id(1)
    last = pl.num_programs(1) - 1

    @pl.when(l == 0)
    def _():
        tok_ref[...] = tok_in_ref[...]

    x = tok_ref[...]                                             # (G,T_pad,D) f32

    # ---- multi-head self-attention -------------------------------------
    h1 = _layernorm(x, ln1w_ref[0], ln1b_ref[0]).astype(_BF16).reshape(GT, D)
    qkv = jnp.dot(h1, wqkv_ref[0], preferred_element_type=_F32) + bqkv_ref[0]
    qkv = qkv.astype(_BF16)            # cast once; f32 accumulation stays in the dot
    q = qkv[:, 0:D].reshape(G, T_pad, D)          # 1/sqrt(hd) pre-folded into Wq/bq
    k = qkv[:, D:2 * D].reshape(G, T_pad, D)
    v = qkv[:, 2 * D:3 * D].reshape(G, T_pad, D)

    # mask zero-padded key rows (index >= T)
    kidx = jax.lax.broadcasted_iota(jnp.int32, (1, 1, T_pad), 2)
    kmask = jnp.where(kidx < T, jnp.float32(0.0), jnp.float32(-1e30))

    # TODO(synk): fuse the head loop into a single two-batch-dim dot_general
    # ('gqhd,gkhd->ghqk') once multi-batch-dim dot_general lowering is
    # guaranteed on Mosaic; the short static loop below keeps K=hd only for the
    # score/context matmuls, while the output projection is ONE full-K matmul.
    ctx_heads = []
    for hh in range(num_heads):
        sl = slice(hh * hd, (hh + 1) * hd)
        s = jnp.einsum('gqd,gkd->gqk', q[:, :, sl], k[:, :, sl],
                       preferred_element_type=_F32)              # (G,T_pad,T_pad)
        s = s + kmask
        s = s - jnp.max(s, axis=-1, keepdims=True)
        p = jnp.exp(s)
        p = p * pl.reciprocal(jnp.sum(p, axis=-1, keepdims=True), approx=True)
        ctx = jnp.einsum('gqk,gkd->gqd', p.astype(_BF16), v[:, :, sl],
                         preferred_element_type=_F32)            # (G,T_pad,hd)
        ctx_heads.append(ctx.astype(_BF16))
    ctx_all = jnp.concatenate(ctx_heads, axis=-1).reshape(GT, D)  # (GT,D) bf16
    attn = jnp.dot(ctx_all, wproj_ref[0],
                   preferred_element_type=_F32) + bproj_ref[0]
    x = x + attn.reshape(G, T_pad, D)

    # ---- MLP (hidden dim chunked to bound the (GT, M) transient) --------
    h2 = _layernorm(x, ln2w_ref[0], ln2b_ref[0]).astype(_BF16).reshape(GT, D)
    Dm = wm1_ref.shape[2]
    chunk = mlp_chunk if (Dm > mlp_chunk and Dm % mlp_chunk == 0) else Dm
    acc = jnp.zeros((GT, D), _F32)
    for c0 in range(0, Dm, chunk):
        hc = jnp.dot(h2, wm1_ref[0, :, c0:c0 + chunk],
                     preferred_element_type=_F32) + bm1_ref[0, :, c0:c0 + chunk]
        # TODO(synk): PyTorch nn.GELU() default is the exact erf GELU; tanh
        # approximation used here for a guaranteed TPU lowering.
        hc = jax.nn.gelu(hc, approximate=True)
        acc = acc + jnp.dot(hc.astype(_BF16), wm2_ref[0, c0:c0 + chunk, :],
                            preferred_element_type=_F32)
    tok_ref[...] = x + (acc + bm2_ref[0]).reshape(G, T_pad, D)

    # ---- last layer: hand only the CLS rows back to HBM -----------------
    @pl.when(l == last)
    def _():
        cls_out_ref[...] = tok_ref[...][:, 0, :]


# ---------------------------------------------------------------------------
# 3) Epilogue: final LayerNorm + classifier head on the CLS rows only.
# ---------------------------------------------------------------------------
def head_kernel(cls_ref, lnfw_ref, lnfb_ref, wh_ref, bh_ref, out_ref):
    xf = _layernorm(cls_ref[...], lnfw_ref[...], lnfb_ref[...])
    out_ref[...] = jnp.dot(xf.astype(_BF16), wh_ref[...],
                           preferred_element_type=_F32) + bh_ref[...]


# ---------------------------------------------------------------------------
# Wrapper: patch extraction, weight prep, BlockSpecs, pallas_calls.
# ---------------------------------------------------------------------------
def _vmem_limit_bytes():
    try:
        cap = int(pltpu.get_tpu_info().vmem_capacity_bytes)
    except Exception:
        cap = 64 * 1024 * 1024          # conservative (v7x-sized) fallback
    return min((cap * 3) // 4, 100 * 1024 * 1024)


def vision_transformer_forward(x, params, *, patch_size, num_blocks, num_heads,
                               num_classes, images_per_step=None,
                               mlp_chunk=1024):
    B, C, Himg, Wimg = x.shape
    P = patch_size
    nH, nW = Himg // P, Wimg // P
    N = nH * nW
    CPP = C * P * P
    D = params["wp"].shape[1]
    L = num_blocks
    T = N + 1
    T_pad = ((T + 15) // 16) * 16                    # bf16-pack (16-row) aligned
    LANE = 128
    C_pad = ((num_classes + LANE - 1) // LANE) * LANE    # lane-dense output width
    hd = D // num_heads
    Dm = params["wm1"].shape[2]

    vmem_limit = _vmem_limit_bytes()

    # Group size: large on 128 MiB parts (amortize per-group weight streaming),
    # small on 64 MiB parts (v7x); never pad a tiny batch beyond the next 8.
    if images_per_step is None:
        images_per_step = 8 if vmem_limit <= 56 * 1024 * 1024 else 32
    G = ((max(images_per_step, 1) + 7) // 8) * 8
    G = min(G, ((B + 7) // 8) * 8)
    num_groups = (B + G - 1) // G
    B_pad = num_groups * G
    if B_pad != B:
        x = jnp.concatenate([x, jnp.zeros((B_pad - B, C, Himg, Wimg), x.dtype)], 0)

    # NCHW -> (groups, G*N, C*P*P)
    patches = x.reshape(B_pad, C, nH, P, nW, P)
    patches = patches.transpose(0, 2, 4, 1, 3, 5).reshape(num_groups, G * N, CPP)
    patches = patches.astype(_BF16)

    # fold the 1/sqrt(hd) attention scale into Wq / bq (free at runtime)
    scale = 1.0 / math.sqrt(hd)
    wqkv = params["wqkv"].at[:, :, :D].multiply(scale)
    bqkv = params["bqkv"].at[:, :D].multiply(scale)

    pos = jnp.zeros((T_pad, D), _F32).at[:T].set(params["pos"])
    wh = jnp.zeros((D, C_pad), _F32).at[:, :num_classes].set(params["wh"])
    bh = jnp.zeros((1, C_pad), _F32).at[:, :num_classes].set(params["bh"])

    # ---- 1) patch embedding -------------------------------------------------
    tokens = pl.pallas_call(
        functools.partial(embed_kernel, num_patches=N),
        out_shape=jax.ShapeDtypeStruct((B_pad, T_pad, D), _F32),
        grid=(num_groups,),
        in_specs=[
            pl.BlockSpec((1, G * N, CPP), lambda g: (g, 0, 0)),
            pl.BlockSpec((CPP, D), lambda g: (0, 0)),
            pl.BlockSpec((1, D), lambda g: (0, 0)),
            pl.BlockSpec((1, D), lambda g: (0, 0)),
            pl.BlockSpec((T_pad, D), lambda g: (0, 0)),
        ],
        out_specs=pl.BlockSpec((G, T_pad, D), lambda g: (g, 0, 0)),
        compiler_params=pltpu.CompilerParams(
            dimension_semantics=("parallel",), vmem_limit_bytes=vmem_limit),
    )(patches, params["wp"].astype(_BF16), params["bp"], params["cls"], pos)

    # ---- 2) transformer blocks (layer axis streams per-layer weights) ------
    per_layer = [
        params["ln1w"].reshape(L, 1, D), params["ln1b"].reshape(L, 1, D),
        wqkv.astype(_BF16), bqkv.reshape(L, 1, 3 * D),
        params["wproj"].astype(_BF16), params["bproj"].reshape(L, 1, D),
        params["ln2w"].reshape(L, 1, D), params["ln2b"].reshape(L, 1, D),
        params["wm1"].astype(_BF16), params["bm1"].reshape(L, 1, Dm),
        params["wm2"].astype(_BF16), params["bm2"].reshape(L, 1, D),
    ]
    layer_specs = [pl.BlockSpec((1,) + tuple(v.shape[1:]), lambda g, l: (l, 0, 0))
                   for v in per_layer]

    cls_tok = pl.pallas_call(
        functools.partial(layer_kernel, num_heads=num_heads, valid_tokens=T,
                          mlp_chunk=mlp_chunk),
        out_shape=jax.ShapeDtypeStruct((B_pad, D), _F32),
        grid=(num_groups, num_blocks),
        in_specs=[pl.BlockSpec((G, T_pad, D), lambda g, l: (g, 0, 0))] + layer_specs,
        out_specs=pl.BlockSpec((G, D), lambda g, l: (g, 0)),
        scratch_shapes=[pltpu.VMEM((G, T_pad, D), _F32)],
        compiler_params=pltpu.CompilerParams(
            dimension_semantics=("parallel", "arbitrary"),
            vmem_limit_bytes=vmem_limit),
    )(tokens, *per_layer)

    # ---- 3) final LN + classifier head on CLS rows only ---------------------
    logits = pl.pallas_call(
        head_kernel,
        out_shape=jax.ShapeDtypeStruct((B_pad, C_pad), _F32),
        grid=(num_groups,),
        in_specs=[
            pl.BlockSpec((G, D), lambda g: (g, 0)),
            pl.BlockSpec((1, D), lambda g: (0, 0)),
            pl.BlockSpec((1, D), lambda g: (0, 0)),
            pl.BlockSpec((D, C_pad), lambda g: (0, 0)),
            pl.BlockSpec((1, C_pad), lambda g: (0, 0)),
        ],
        out_specs=pl.BlockSpec((G, C_pad), lambda g: (g, 0)),
        compiler_params=pltpu.CompilerParams(
            dimension_semantics=("parallel",), vmem_limit_bytes=vmem_limit),
    )(cls_tok, params["lnfw"], params["lnfb"], wh.astype(_BF16), bh)

    return logits[:B, :num_classes]


# ---------------------------------------------------------------------------
# Deterministic parameter construction
# ---------------------------------------------------------------------------
def make_params(key, *, in_ch, patch_size, embed_dim, num_blocks, mlp_dim,
                num_tokens, num_classes):
    CPP = in_ch * patch_size * patch_size
    D, L = embed_dim, num_blocks
    ks = jax.random.split(key, 16)
    s = 0.02
    f32 = jnp.float32
    return {
        "wp":   s * jax.random.normal(ks[0], (CPP, D), f32),
        "bp":   jnp.zeros((1, D), f32),
        "cls":  s * jax.random.normal(ks[1], (1, D), f32),
        "pos":  s * jax.random.normal(ks[2], (num_tokens, D), f32),
        "ln1w": jnp.ones((L, D), f32),
        "ln1b": jnp.zeros((L, D), f32),
        "wqkv": s * jax.random.normal(ks[3], (L, D, 3 * D), f32),
        "bqkv": jnp.zeros((L, 3 * D), f32),
        "wproj": s * jax.random.normal(ks[4], (L, D, D), f32),
        "bproj": jnp.zeros((L, D), f32),
        "ln2w": jnp.ones((L, D), f32),
        "ln2b": jnp.zeros((L, D), f32),
        "wm1":  s * jax.random.normal(ks[5], (L, D, mlp_dim), f32),
        "bm1":  jnp.zeros((L, mlp_dim), f32),
        "wm2":  s * jax.random.normal(ks[6], (L, mlp_dim, D), f32),
        "bm2":  jnp.zeros((L, D), f32),
        "lnfw": jnp.ones((1, D), f32),
        "lnfb": jnp.zeros((1, D), f32),
        "wh":   s * jax.random.normal(ks[7], (D, num_classes), f32),
        "bh":   jnp.zeros((1, num_classes), f32),
    }


if __name__ == "__main__":
    # Small shapes consistent with the module: patch_size=16, num_classes=10.
    # num_blocks kept small (module default is 6) for a fast synthetic test.
    B, C, Himg, Wimg = 2, 3, 32, 32
    patch_size = 16
    num_classes = 10
    num_blocks = 2
    embed_dim = 32
    num_heads = 4
    mlp_dim = 4 * embed_dim
    num_patches = (Himg // patch_size) * (Wimg // patch_size)
    num_tokens = num_patches + 1

    root = jax.random.PRNGKey(0)
    k_x, k_p = jax.random.split(root)
    x = jax.random.normal(k_x, (B, C, Himg, Wimg), jnp.float32)

    params = make_params(
        k_p, in_ch=C, patch_size=patch_size, embed_dim=embed_dim,
        num_blocks=num_blocks, mlp_dim=mlp_dim, num_tokens=num_tokens,
        num_classes=num_classes)

    logits = vision_transformer_forward(
        x, params, patch_size=patch_size, num_blocks=num_blocks,
        num_heads=num_heads, num_classes=num_classes)
    jax.block_until_ready(logits)
    assert logits.shape == (B, num_classes)
    assert bool(jnp.all(jnp.isfinite(logits)))
    print("KERNEL_OK")
</pallas_src>

<mosaic_0001>
module attributes {stable_mosaic.version = 11 : i64} {
  func.func @embed_kernel(%arg0: i32, %arg1: memref<1x32x768xbf16, #tpu.memory_space<vmem>>, %arg2: memref<768x32xbf16, #tpu.memory_space<vmem>>, %arg3: memref<1x32xf32, #tpu.memory_space<vmem>>, %arg4: memref<1x32xf32, #tpu.memory_space<vmem>>, %arg5: memref<16x32xf32, #tpu.memory_space<vmem>>, %arg6: memref<8x16x32xf32, #tpu.memory_space<vmem>>) attributes {dimension_semantics = [#tpu.dimension_semantics<parallel>], iteration_bounds = array<i64: 1>, scalar_prefetch = 0 : i64, scratch_operands = 0 : i64, tpu.core_type = #tpu.core_type<tc>, window_params = [{transform_indices = @transform_0, window_bounds = array<i64: 1, 32, 768>}, {pipeline_mode = #tpu.pipeline_mode<synchronous>, transform_indices = @transform_1, window_bounds = array<i64: 768, 32>}, {pipeline_mode = #tpu.pipeline_mode<synchronous>, transform_indices = @transform_2, window_bounds = array<i64: 1, 32>}, {pipeline_mode = #tpu.pipeline_mode<synchronous>, transform_indices = @transform_3, window_bounds = array<i64: 1, 32>}, {pipeline_mode = #tpu.pipeline_mode<synchronous>, transform_indices = @transform_4, window_bounds = array<i64: 16, 32>}, {transform_indices = @transform_5, window_bounds = array<i64: 8, 16, 32>}]} {
    %c0 = arith.constant 0 : index
    %c0_0 = arith.constant 0 : index
    %c0_1 = arith.constant 0 : index
    %0 = vector.load %arg1[%c0, %c0_0, %c0_1] : memref<1x32x768xbf16, #tpu.memory_space<vmem>>, vector<1x32x768xbf16>
    %1 = vector.shape_cast %0 : vector<1x32x768xbf16> to vector<32x768xbf16>
    %c0_2 = arith.constant 0 : index
    %c0_3 = arith.constant 0 : index
    %2 = vector.load %arg2[%c0_2, %c0_3] : memref<768x32xbf16, #tpu.memory_space<vmem>>, vector<768x32xbf16>
    %cst = arith.constant dense<0.000000e+00> : vector<32x32xf32>
    %3 = tpu.matmul %1, %2, %cst {dimension_numbers = #tpu.dot_dimension_numbers<[1], [0], [0], [1], [0, 0, 1, 1], [], []>} : vector<32x768xbf16>, vector<768x32xbf16>, vector<32x32xf32> -> vector<32x32xf32>
    %c0_4 = arith.constant 0 : index
    %c0_5 = arith.constant 0 : index
    %4 = vector.load %arg3[%c0_4, %c0_5] : memref<1x32xf32, #tpu.memory_space<vmem>>, vector<1x32xf32>
    %5 = vector.broadcast %4 : vector<1x32xf32> to vector<32x32xf32>
    %6 = arith.addf %3, %5 : vector<32x32xf32>
    %7 = vector.shape_cast %6 : vector<32x32xf32> to vector<8x4x32xf32>
    %8 = tpu.iota {dimensions = array<i32: 1>} : vector<1x16x1xi32>
    %c0_6 = arith.constant 0 : index
    %c0_7 = arith.constant 0 : index
    %9 = vector.load %arg5[%c0_6, %c0_7] : memref<16x32xf32, #tpu.memory_space<vmem>>, vector<16x32xf32>
    %10 = vector.shape_cast %9 : vector<16x32xf32> to vector<1x16x32xf32>
    %c0_i32 = arith.constant 0 : i32
    %11 = vector.broadcast %c0_i32 : i32 to vector<1x16x1xi32>
    %12 = arith.cmpi eq, %8, %11 : vector<1x16x1xi32>
    %c0_8 = arith.constant 0 : index
    %c0_9 = arith.constant 0 : index
    %13 = vector.load %arg4[%c0_8, %c0_9] : memref<1x32xf32, #tpu.memory_space<vmem>>, vector<1x32xf32>
    %14 = vector.shape_cast %13 : vector<1x32xf32> to vector<1x1x32xf32>
    %cst_10 = arith.constant 0.000000e+00 : f32
    %15 = vector.shape_cast %12 : vector<1x16x1xi1> to vector<1x16x1xi1>
    %16 = vector.broadcast %15 : vector<1x16x1xi1> to vector<1x16x32xi1>
    %17 = vector.shape_cast %14 : vector<1x1x32xf32> to vector<1x1x32xf32>
    %18 = vector.broadcast %17 : vector<1x1x32xf32> to vector<1x16x32xf32>
    %19 = vector.broadcast %cst_10 : f32 to vector<1x16x32xf32>
    %20 = arith.select %16, %18, %19 : vector<1x16x32xi1>, vector<1x16x32xf32>
    %21 = arith.addf %10, %20 : vector<1x16x32xf32>
    %22 = vector.shape_cast %21 : vector<1x16x32xf32> to vector<1x16x32xf32>
    %23 = vector.broadcast %22 : vector<1x16x32xf32> to vector<8x16x32xf32>
    %c0_11 = arith.constant 0 : index
    %c0_12 = arith.constant 0 : index
    %c0_13 = arith.constant 0 : index
    %24 = vector.load %arg6[%c0_11, %c0_12, %c0_13] : memref<8x16x32xf32, #tpu.memory_space<vmem>>, vector<8x16x32xf32>
    tpu.vector_store %arg6[%c0_11, %c0_12, %c0_13], %23 {strides = array<i32>} : memref<8x16x32xf32, #tpu.memory_space<vmem>>, vector<8x16x32xf32>,
    %c1 = arith.constant 1 : index
    %c0_14 = arith.constant 0 : index
    %25 = vector.load %arg5[%c1, %c0_14] : memref<16x32xf32, #tpu.memory_space<vmem>>, vector<4x32xf32>
    %26 = vector.shape_cast %25 : vector<4x32xf32> to vector<1x4x32xf32>
    %27 = vector.broadcast %26 : vector<1x4x32xf32> to vector<8x4x32xf32>
    %28 = arith.addf %7, %27 : vector<8x4x32xf32>
    %c0_15 = arith.constant 0 : index
    %c1_16 = arith.constant 1 : index
    %c0_17 = arith.constant 0 : index
    %29 = vector.load %arg6[%c0_15, %c1_16, %c0_17] : memref<8x16x32xf32, #tpu.memory_space<vmem>>, vector<8x4x32xf32>
    tpu.vector_store %arg6[%c0_15, %c1_16, %c0_17], %28 {strides = array<i32>} : memref<8x16x32xf32, #tpu.memory_space<vmem>>, vector<8x4x32xf32>,
    return
  }
  func.func @transform_0(%arg0: i32) -> (i32, i32, i32) {
    %c0_i32 = arith.constant 0 : i32
    %c0_i32_0 = arith.constant 0 : i32
    %c0_i32_1 = arith.constant 0 : i32
    return %arg0, %c0_i32, %c0_i32_0 : i32, i32, i32
  }
  func.func @transform_1(%arg0: i32) -> (i32, i32) {
    %c0_i32 = arith.constant 0 : i32
    %c0_i32_0 = arith.constant 0 : i32
    %c0_i32_1 = arith.constant 0 : i32
    return %c0_i32, %c0_i32_0 : i32, i32
  }
  func.func @transform_2(%arg0: i32) -> (i32, i32) {
    %c0_i32 = arith.constant 0 : i32
    %c0_i32_0 = arith.constant 0 : i32
    %c0_i32_1 = arith.constant 0 : i32
    return %c0_i32, %c0_i32_0 : i32, i32
  }
  func.func @transform_3(%arg0: i32) -> (i32, i32) {
    %c0_i32 = arith.constant 0 : i32
    %c0_i32_0 = arith.constant 0 : i32
    %c0_i32_1 = arith.constant 0 : i32
    return %c0_i32, %c0_i32_0 : i32, i32
  }
  func.func @transform_4(%arg0: i32) -> (i32, i32) {
    %c0_i32 = arith.constant 0 : i32
    %c0_i32_0 = arith.constant 0 : i32
    %c0_i32_1 = arith.constant 0 : i32
    return %c0_i32, %c0_i32_0 : i32, i32
  }
  func.func @transform_5(%arg0: i32) -> (i32, i32, i32) {
    %c0_i32 = arith.constant 0 : i32
    %c0_i32_0 = arith.constant 0 : i32
    %c0_i32_1 = arith.constant 0 : i32
    return %arg0, %c0_i32, %c0_i32_0 : i32, i32, i32
  }
}

</mosaic_0001>

<llo_original>
// kernel: tpu_custom_call.1
$region0: #{tpu_custom_call.1}
  #allocation0 [shape = 'u32[]', space=smem, size = 0x4, offset = 0x4, fixed_abs, tag = 'smem constant byte address 0x4 - core index']
  #allocation1 [shape = 'u32[144,128]{1,0:T(1,128)}', space=vmem, size = 0x12000, scoped, tag = 'internal scratch']
  %s0 = inlined_call_operand.vmem [shape: bf16[1,32,768], index: 0, kind: input, shape index: {}]
  %s1 = inlined_call_operand.vmem [shape: bf16[768,32], index: 1, kind: input, shape index: {}]
  %s2 = inlined_call_operand.vmem [shape: f32[1,32], index: 2, kind: input, shape index: {}]
  %s3 = inlined_call_operand.vmem [shape: f32[1,32], index: 3, kind: input, shape index: {}]
  %s4 = inlined_call_operand.vmem [shape: f32[16,32], index: 4, kind: input, shape index: {}]
  %s5 = inlined_call_operand.hbm [shape: f32[8,16,32], index: 5, kind: output, shape index: {}]
  %s6 = sld [smem:[#allocation0]]
  $region30: #{tpu_custom_call.1} parent=0
    _
  %s8 = ssub.s32 1, %s6
  %s9 = scalar_select 0, %s8, %s6
  $region1: #{tpu_custom_call.1} parent=0
    #allocation2 [shape = 'u8[65536]{0}', space=vmem, size = 0x10000, scoped, tag = 'output window, operand 0, single buffered']
    #allocation3 [shape = 's32[1]{0}', space=sflag, size = 0x4, scoped, tag = 'scoped memory for tpu_custom_call.1']
    %10 = vsyncpa [#allocation3], 0
    // Predicated region
    $region2: #{tpu_custom_call.1} parent=1 // pred_check
      _
    $region3: #{tpu_custom_call.1} parent=1 // pred_check_branch
      %12 = sbr.rel (0) target = $region5
    $region4: #{tpu_custom_call.1} parent=1 // pred_region
      _
    $region5: #{tpu_custom_call.1} parent=1 // pred_fallthru
      _
    // Predicated region
    $region6: #{tpu_custom_call.1} parent=1 // pred_check
      _
    $region7: #{tpu_custom_call.1} parent=1 // pred_check_branch
      %14 = sbr.rel (0) target = $region9
    $region8: #{tpu_custom_call.1} parent=1 // pred_region
      _
    $region9: #{tpu_custom_call.1} parent=1 // pred_fallthru
      _
    // Predicated region
    $region10: #{tpu_custom_call.1} parent=1 // pred_check
      _
    $region11: #{tpu_custom_call.1} parent=1 // pred_check_branch
      %16 = sbr.rel (0) target = $region13
    $region12: #{tpu_custom_call.1} parent=1 // pred_region
      _
    $region13: #{tpu_custom_call.1} parent=1 // pred_fallthru
      _
    // Predicated region
    $region14: #{tpu_custom_call.1} parent=1 // pred_check
      _
    $region15: #{tpu_custom_call.1} parent=1 // pred_check_branch
      %18 = sbr.rel (0) target = $region17
    $region16: #{tpu_custom_call.1} parent=1 // pred_region
      _
    $region17: #{tpu_custom_call.1} parent=1 // pred_fallthru
      _
    // Predicated region
    $region18: #{tpu_custom_call.1} parent=1 // pred_check
      _
    $region19: #{tpu_custom_call.1} parent=1 // pred_check_branch
      %20 = sbr.rel (0) target = $region21
    $region20: #{tpu_custom_call.1} parent=1 // pred_region
      _
    $region21: #{tpu_custom_call.1} parent=1 // pred_fallthru
      _
    %v22 = vld [vmem:[%s0] sm:$0xff]
    %v23 = vld [vmem:[%s0 + $0x8] sm:$0xff]
    %v24 = vld [vmem:[%s0 + $0x10] sm:$0xff]
    %v25 = vld [vmem:[%s0 + $0x18] sm:$0xff]
    %v26 = vld [vmem:[%s0 + $0x20] sm:$0xff]
    %v27 = vld [vmem:[%s0 + $0x28] sm:$0xff]
    %v28 = vld [vmem:[%s0 + $0x30] sm:$0xff]
    %v29 = vld [vmem:[%s0 + $0x38] sm:$0xff]
    %v30 = vld [vmem:[%s0 + $0x40] sm:$0xff]
    %v31 = vld [vmem:[%s0 + $0x48] sm:$0xff]
    %v32 = vld [vmem:[%s0 + $0x50] sm:$0xff]
    %v33 = vld [vmem:[%s0 + $0x58] sm:$0xff]
    %v34 = vld [vmem:[%s1] sm:$0xf]
    %v35 = vld [vmem:[%s1 + $0x4] sm:$0xf]
    %v36 = vld [vmem:[%s1 + $0x8] sm:$0xf]
    %v37 = vld [vmem:[%s1 + $0xc] sm:$0xf]
    %v38 = vld [vmem:[%s1 + $0x10] sm:$0xf]
    %v39 = vld [vmem:[%s1 + $0x14] sm:$0xf]
    %v40 = vld [vmem:[%s1 + $0x18] sm:$0xf]
    %v41 = vld [vmem:[%s1 + $0x1c] sm:$0xf]
    %v42 = vld [vmem:[%s1 + $0x20] sm:$0xf]
    %v43 = vld [vmem:[%s1 + $0x24] sm:$0xf]
    %v44 = vld [vmem:[%s1 + $0x28] sm:$0xf]
    %v45 = vld [vmem:[%s1 + $0x2c] sm:$0xf]
    %v46 = vld [vmem:[%s1 + $0x30] sm:$0xf]
    %v47 = vld [vmem:[%s1 + $0x34] sm:$0xf]
    %v48 = vld [vmem:[%s1 + $0x38] sm:$0xf]
    %v49 = vld [vmem:[%s1 + $0x3c] sm:$0xf]
    %v50 = vld [vmem:[%s1 + $0x40] sm:$0xf]
    %v51 = vld [vmem:[%s1 + $0x44] sm:$0xf]
    %v52 = vld [vmem:[%s1 + $0x48] sm:$0xf]
    %v53 = vld [vmem:[%s1 + $0x4c] sm:$0xf]
    %v54 = vld [vmem:[%s1 + $0x50] sm:$0xf]
    %v55 = vld [vmem:[%s1 + $0x54] sm:$0xf]
    %v56 = vld [vmem:[%s1 + $0x58] sm:$0xf]
    %v57 = vld [vmem:[%s1 + $0x5c] sm:$0xf]
    %v58 = vld [vmem:[%s1 + $0x60] sm:$0xf]
    %v59 = vld [vmem:[%s1 + $0x64] sm:$0xf]
    %v60 = vld [vmem:[%s1 + $0x68] sm:$0xf]
    %v61 = vld [vmem:[%s1 + $0x6c] sm:$0xf]
    %v62 = vld [vmem:[%s1 + $0x70] sm:$0xf]
    %v63 = vld [vmem:[%s1 + $0x74] sm:$0xf]
    %v64 = vld [vmem:[%s1 + $0x78] sm:$0xf]
    %v65 = vld [vmem:[%s1 + $0x7c] sm:$0xf]
    %v66 = vld [vmem:[%s1 + $0x80] sm:$0xf]
    %v67 = vld [vmem:[%s1 + $0x84] sm:$0xf]
    %v68 = vld [vmem:[%s1 + $0x88] sm:$0xf]
    %v69 = vld [vmem:[%s1 + $0x8c] sm:$0xf]
    %v70 = vld [vmem:[%s1 + $0x90] sm:$0xf]
    %v71 = vld [vmem:[%s1 + $0x94] sm:$0xf]
    %v72 = vld [vmem:[%s1 + $0x98] sm:$0xf]
    %v73 = vld [vmem:[%s1 + $0x9c] sm:$0xf]
    %v74 = vld [vmem:[%s1 + $0xa0] sm:$0xf]
    %v75 = vld [vmem:[%s1 + $0xa4] sm:$0xf]
    %v76 = vld [vmem:[%s1 + $0xa8] sm:$0xf]
    %v77 = vld [vmem:[%s1 + $0xac] sm:$0xf]
    %v78 = vld [vmem:[%s1 + $0xb0] sm:$0xf]
    %v79 = vld [vmem:[%s1 + $0xb4] sm:$0xf]
    %v80 = vld [vmem:[%s1 + $0xb8] sm:$0xf]
    %v81 = vld [vmem:[%s1 + $0xbc] sm:$0xf]
    %v82 = vld [vmem:[%s1 + $0xc0] sm:$0xf]
    %v83 = vld [vmem:[%s1 + $0xc4] sm:$0xf]
    %v84 = vld [vmem:[%s1 + $0xc8] sm:$0xf]
    %v85 = vld [vmem:[%s1 + $0xcc] sm:$0xf]
    %v86 = vld [vmem:[%s1 + $0xd0] sm:$0xf]
    %v87 = vld [vmem:[%s1 + $0xd4] sm:$0xf]
    %v88 = vld [vmem:[%s1 + $0xd8] sm:$0xf]
    %v89 = vld [vmem:[%s1 + $0xdc] sm:$0xf]
    %v90 = vld [vmem:[%s1 + $0xe0] sm:$0xf]
    %v91 = vld [vmem:[%s1 + $0xe4] sm:$0xf]
    %v92 = vld [vmem:[%s1 + $0xe8] sm:$0xf]
    %v93 = vld [vmem:[%s1 + $0xec] sm:$0xf]
    %v94 = vld [vmem:[%s1 + $0xf0] sm:$0xf]
    %v95 = vld [vmem:[%s1 + $0xf4] sm:$0xf]
    %v96 = vld [vmem:[%s1 + $0xf8] sm:$0xf]
    %v97 = vld [vmem:[%s1 + $0xfc] sm:$0xf]
    %v98 = vld [vmem:[%s1 + $0x100] sm:$0xf]
    %v99 = vld [vmem:[%s1 + $0x104] sm:$0xf]
    %v100 = vld [vmem:[%s1 + $0x108] sm:$0xf]
    %v101 = vld [vmem:[%s1 + $0x10c] sm:$0xf]
    %v102 = vld [vmem:[%s1 + $0x110] sm:$0xf]
    %v103 = vld [vmem:[%s1 + $0x114] sm:$0xf]
    %v104 = vld [vmem:[%s1 + $0x118] sm:$0xf]
    %v105 = vld [vmem:[%s1 + $0x11c] sm:$0xf]
    %v106 = vld [vmem:[%s1 + $0x120] sm:$0xf]
    %v107 = vld [vmem:[%s1 + $0x124] sm:$0xf]
    %v108 = vld [vmem:[%s1 + $0x128] sm:$0xf]
    %v109 = vld [vmem:[%s1 + $0x12c] sm:$0xf]
    %v110 = vld [vmem:[%s1 + $0x130] sm:$0xf]
    %v111 = vld [vmem:[%s1 + $0x134] sm:$0xf]
    %v112 = vld [vmem:[%s1 + $0x138] sm:$0xf]
    %v113 = vld [vmem:[%s1 + $0x13c] sm:$0xf]
    %v114 = vld [vmem:[%s1 + $0x140] sm:$0xf]
    %v115 = vld [vmem:[%s1 + $0x144] sm:$0xf]
    %v116 = vld [vmem:[%s1 + $0x148] sm:$0xf]
    %v117 = vld [vmem:[%s1 + $0x14c] sm:$0xf]
    %v118 = vld [vmem:[%s1 + $0x150] sm:$0xf]
    %v119 = vld [vmem:[%s1 + $0x154] sm:$0xf]
    %v120 = vld [vmem:[%s1 + $0x158] sm:$0xf]
    %v121 = vld [vmem:[%s1 + $0x15c] sm:$0xf]
    %v122 = vld [vmem:[%s1 + $0x160] sm:$0xf]
    %v123 = vld [vmem:[%s1 + $0x164] sm:$0xf]
    %v124 = vld [vmem:[%s1 + $0x168] sm:$0xf]
    %v125 = vld [vmem:[%s1 + $0x16c] sm:$0xf]
    %v126 = vld [vmem:[%s1 + $0x170] sm:$0xf]
    %v127 = vld [vmem:[%s1 + $0x174] sm:$0xf]
    %v128 = vld [vmem:[%s1 + $0x178] sm:$0xf]
    %v129 = vld [vmem:[%s1 + $0x17c] sm:$0xf]
    %v130 = vld [vmem:[%s2] sm:$0x1]
    %v132 = vlaneseq
    %v133 = vshrl.u32 %v132, 7
    %v134 = vsub.s32 0, %v133
    %v135 = vrot.slane %v130, %v134
    %v149 = vunpack.c.l.b16 %v22
    %v150 = vunpack.c.h.b16 %v22
    %v151 = vunpack.c.l.b16 %v23
    %v152 = vunpack.c.h.b16 %v23
    %v153 = vunpack.c.l.b16 %v24
    %v154 = vunpack.c.h.b16 %v24
    %v155 = vunpack.c.l.b16 %v25
    %v156 = vunpack.c.h.b16 %v25
    %v157 = vunpack.c.l.b16 %v26
    %v158 = vunpack.c.h.b16 %v26
    %v159 = vunpack.c.l.b16 %v27
    %v160 = vunpack.c.h.b16 %v27
    %v161 = vunpack.c.l.b16 %v28
    %v162 = vunpack.c.h.b16 %v28
    %v163 = vunpack.c.l.b16 %v29
    %v164 = vunpack.c.h.b16 %v29
    %v165 = vunpack.c.l.b16 %v30
    %v166 = vunpack.c.h.b16 %v30
    %v167 = vunpack.c.l.b16 %v31
    %v168 = vunpack.c.h.b16 %v31
    %v169 = vunpack.c.l.b16 %v32
    %v170 = vunpack.c.h.b16 %v32
    %v171 = vunpack.c.l.b16 %v33
    %v172 = vunpack.c.h.b16 %v33
    %v173 = vpack.c.b16 %v155, %v149
    %v174 = vpack.c.b16 %v156, %v150
    %v175 = vpack.c.b16 %v157, %v151
    %v176 = vpack.c.b16 %v158, %v152
    %v177 = vpack.c.b16 %v159, %v153
    %v178 = vpack.c.b16 %v160, %v154
    %v179 = vpack.c.b16 %v167, %v161
    %v180 = vpack.c.b16 %v168, %v162
    %v181 = vpack.c.b16 %v169, %v163
    %v182 = vpack.c.b16 %v170, %v164
    %v183 = vpack.c.b16 %v171, %v165
    %v184 = vpack.c.b16 %v172, %v166
    %v293 = vunpack.c.l.b16 %v34
    %v294 = vunpack.c.l.b16 %v35
    %v295 = vunpack.c.l.b16 %v36
    %v296 = vunpack.c.l.b16 %v37
    %v297 = vunpack.c.l.b16 %v38
    %v298 = vunpack.c.l.b16 %v39
    %v299 = vunpack.c.l.b16 %v40
    %v300 = vunpack.c.l.b16 %v41
    %v301 = vunpack.c.l.b16 %v42
    %v302 = vunpack.c.l.b16 %v43
    %v303 = vunpack.c.l.b16 %v44
    %v304 = vunpack.c.l.b16 %v45
    %v305 = vunpack.c.l.b16 %v46
    %v306 = vunpack.c.l.b16 %v47
    %v307 = vunpack.c.l.b16 %v48
    %v308 = vunpack.c.l.b16 %v49
    %v309 = vunpack.c.l.b16 %v50
    %v310 = vunpack.c.l.b16 %v51
    %v311 = vunpack.c.l.b16 %v52
    %v312 = vunpack.c.l.b16 %v53
    %v313 = vunpack.c.l.b16 %v54
    %v314 = vunpack.c.l.b16 %v55
    %v315 = vunpack.c.l.b16 %v56
    %v316 = vunpack.c.l.b16 %v57
    %v317 = vunpack.c.l.b16 %v58
    %v318 = vunpack.c.l.b16 %v59
    %v319 = vunpack.c.l.b16 %v60
    %v320 = vunpack.c.l.b16 %v61
    %v321 = vunpack.c.l.b16 %v62
    %v322 = vunpack.c.l.b16 %v63
    %v323 = vunpack.c.l.b16 %v64
    %v324 = vunpack.c.l.b16 %v65
    %v325 = vunpack.c.l.b16 %v66
    %v326 = vunpack.c.l.b16 %v67
    %v327 = vunpack.c.l.b16 %v68
    %v328 = vunpack.c.l.b16 %v69
    %v329 = vunpack.c.l.b16 %v70
    %v330 = vunpack.c.l.b16 %v71
    %v331 = vunpack.c.l.b16 %v72
    %v332 = vunpack.c.l.b16 %v73
    %v333 = vunpack.c.l.b16 %v74
    %v334 = vunpack.c.l.b16 %v75
    %v335 = vunpack.c.l.b16 %v76
    %v336 = vunpack.c.l.b16 %v77
    %v337 = vunpack.c.l.b16 %v78
    %v338 = vunpack.c.l.b16 %v79
    %v339 = vunpack.c.l.b16 %v80
    %v340 = vunpack.c.l.b16 %v81
    %v341 = vunpack.c.l.b16 %v82
    %v342 = vunpack.c.l.b16 %v83
    %v343 = vunpack.c.l.b16 %v84
    %v344 = vunpack.c.l.b16 %v85
    %v345 = vunpack.c.l.b16 %v86
    %v346 = vunpack.c.l.b16 %v87
    %v347 = vunpack.c.l.b16 %v88
    %v348 = vunpack.c.l.b16 %v89
    %v349 = vunpack.c.l.b16 %v90
    %v350 = vunpack.c.l.b16 %v91
    %v351 = vunpack.c.l.b16 %v92
    %v352 = vunpack.c.l.b16 %v93
    %v353 = vunpack.c.l.b16 %v94
    %v354 = vunpack.c.l.b16 %v95
    %v355 = vunpack.c.l.b16 %v96
    %v356 = vunpack.c.l.b16 %v97
    %v357 = vunpack.c.l.b16 %v98
    %v358 = vunpack.c.l.b16 %v99
    %v359 = vunpack.c.l.b16 %v100
    %v360 = vunpack.c.l.b16 %v101
    %v361 = vunpack.c.l.b16 %v102
    %v362 = vunpack.c.l.b16 %v103
    %v363 = vunpack.c.l.b16 %v104
    %v364 = vunpack.c.l.b16 %v105
    %v365 = vunpack.c.l.b16 %v106
    %v366 = vunpack.c.l.b16 %v107
    %v367 = vunpack.c.l.b16 %v108
    %v368 = vunpack.c.l.b16 %v109
    %v369 = vunpack.c.l.b16 %v110
    %v370 = vunpack.c.l.b16 %v111
    %v371 = vunpack.c.l.b16 %v112
    %v372 = vunpack.c.l.b16 %v113
    %v373 = vunpack.c.l.b16 %v114
    %v374 = vunpack.c.l.b16 %v115
    %v375 = vunpack.c.l.b16 %v116
    %v376 = vunpack.c.l.b16 %v117
    %v377 = vunpack.c.l.b16 %v118
    %v378 = vunpack.c.l.b16 %v119
    %v379 = vunpack.c.l.b16 %v120
    %v380 = vunpack.c.l.b16 %v121
    %v381 = vunpack.c.l.b16 %v122
    %v382 = vunpack.c.l.b16 %v123
    %v383 = vunpack.c.l.b16 %v124
    %v384 = vunpack.c.l.b16 %v125
    %v385 = vunpack.c.l.b16 %v126
    %v386 = vunpack.c.l.b16 %v127
    %v387 = vunpack.c.l.b16 %v128
    %v388 = vunpack.c.l.b16 %v129
    %v389 = vpack.c.b16 %v294, %v293
    %v390 = vpack.c.b16 %v296, %v295
    %v391 = vpack.c.b16 %v298, %v297
    %v392 = vpack.c.b16 %v300, %v299
    %v393 = vpack.c.b16 %v302, %v301
    %v394 = vpack.c.b16 %v304, %v303
    %v395 = vpack.c.b16 %v306, %v305
    %v396 = vpack.c.b16 %v308, %v307
    %v397 = vpack.c.b16 %v310, %v309
    %v398 = vpack.c.b16 %v312, %v311
    %v399 = vpack.c.b16 %v314, %v313
    %v400 = vpack.c.b16 %v316, %v315
    %v401 = vpack.c.b16 %v318, %v317
    %v402 = vpack.c.b16 %v320, %v319
    %v403 = vpack.c.b16 %v322, %v321
    %v404 = vpack.c.b16 %v324, %v323
    %v405 = vpack.c.b16 %v326, %v325
    %v406 = vpack.c.b16 %v328, %v327
    %v407 = vpack.c.b16 %v330, %v329
    %v408 = vpack.c.b16 %v332, %v331
    %v409 = vpack.c.b16 %v334, %v333
    %v410 = vpack.c.b16 %v336, %v335
    %v411 = vpack.c.b16 %v338, %v337
    %v412 = vpack.c.b16 %v340, %v339
    %v413 = vpack.c.b16 %v342, %v341
    %v414 = vpack.c.b16 %v344, %v343
    %v415 = vpack.c.b16 %v346, %v345
    %v416 = vpack.c.b16 %v348, %v347
    %v417 = vpack.c.b16 %v350, %v349
    %v418 = vpack.c.b16 %v352, %v351
    %v419 = vpack.c.b16 %v354, %v353
    %v420 = vpack.c.b16 %v356, %v355
    %v421 = vpack.c.b16 %v358, %v357
    %v422 = vpack.c.b16 %v360, %v359
    %v423 = vpack.c.b16 %v362, %v361
    %v424 = vpack.c.b16 %v364, %v363
    %v425 = vpack.c.b16 %v366, %v365
    %v426 = vpack.c.b16 %v368, %v367
    %v427 = vpack.c.b16 %v370, %v369
    %v428 = vpack.c.b16 %v372, %v371
    %v429 = vpack.c.b16 %v374, %v373
    %v430 = vpack.c.b16 %v376, %v375
    %v431 = vpack.c.b16 %v378, %v377
    %v432 = vpack.c.b16 %v380, %v379
    %v433 = vpack.c.b16 %v382, %v381
    %v434 = vpack.c.b16 %v384, %v383
    %v435 = vpack.c.b16 %v386, %v385
    %v436 = vpack.c.b16 %v388, %v387
    %485 = vmatprep.subr.bf16.mxu0 0
    %486 = vmatpush1.bf16.msra.mxu0 %v389
    %487 = vmatprep.subr.bf16.mxu0 0
    %488 = vmatpush1.bf16.msra.mxu0 %v390
    %489 = vmatprep.subr.bf16.mxu0 0
    %490 = vmatpush1.bf16.msra.mxu0 %v391
    %491 = vmatprep.subr.bf16.mxu0 0
    %492 = vmatpush1.bf16.msra.mxu0 %v392
    %493 = vmatprep.subr.bf16.mxu0 0
    %494 = vmatpush1.bf16.msra.mxu0 %v393
    %495 = vmatprep.subr.bf16.mxu0 0
    %496 = vmatpush1.bf16.msra.mxu0 %v394
    %497 = vmatprep.subr.bf16.mxu0 0
    %498 = vmatpush1.bf16.msra.mxu0 %v395
    %499 = vmatprep.subr.bf16.mxu0 0
    %500 = vmatpush1.bf16.msra.mxu0 %v396
    %501 = vmatprep.subr.bf16.mxu0 0
    %502 = vmatpush1.bf16.msra.mxu0 %v397
    %503 = vmatprep.subr.bf16.mxu0 0
    %504 = vmatpush1.bf16.msra.mxu0 %v398
    %505 = vmatprep.subr.bf16.mxu0 0
    %506 = vmatpush1.bf16.msra.mxu0 %v399
    %507 = vmatprep.subr.bf16.mxu0 0
    %508 = vmatpush1.bf16.msra.mxu0 %v400
    %509 = vmatprep.subr.bf16.mxu0 0
    %510 = vmatpush1.bf16.msra.mxu0 %v401
    %511 = vmatprep.subr.bf16.mxu0 0
    %512 = vmatpush1.bf16.msra.mxu0 %v402
    %513 = vmatprep.subr.bf16.mxu0 0
    %514 = vmatpush1.bf16.msra.mxu0 %v403
    %515 = vmatprep.subr.bf16.mxu0 0
    %516 = vmatpush1.bf16.msra.mxu0 %v404
    %517 = vmatprep.mubr.bf16.mxu0 %v174
    %518 = vmatmul.mubr.bf16.gmra.mrb[0].mxu0 %v173
    %v519 = vpop.f32.mrb[0].mxu0
    %v520 = vadd.f32 %v135, %v519
    %v521 = vpop.f32.mrb[0].mxu0
    %v522 = vpop.f32.mrb[0].mxu0
    %v523 = vadd.f32 %v135, %v522
    %v524 = vpop.f32.mrb[0].mxu0
    %525 = vmatprep.mubr.bf16.mxu0 %v180
    %526 = vmatmul.mubr.bf16.gmra.mrb[0].mxu0 %v179
    %v527 = vpop.f32.mrb[0].mxu0
    %v528 = vadd.f32 %v135, %v527
    %v529 = vpop.f32.mrb[0].mxu0
    %v530 = vpop.f32.mrb[0].mxu0
    %v531 = vadd.f32 %v135, %v530
    %v532 = vpop.f32.mrb[0].mxu0
    %533 = vdwg.mxu0
    %534 = vmatprep.subr.bf16.mxu0 0
    %535 = vmatpush1.bf16.msra.mxu0 %v405
    %536 = vmatprep.subr.bf16.mxu0 0
    %537 = vmatpush1.bf16.msra.mxu0 %v406
    %538 = vmatprep.subr.bf16.mxu0 0
    %539 = vmatpush1.bf16.msra.mxu0 %v407
    %540 = vmatprep.subr.bf16.mxu0 0
    %541 = vmatpush1.bf16.msra.mxu0 %v408
    %542 = vmatprep.subr.bf16.mxu0 0
    %543 = vmatpush1.bf16.msra.mxu0 %v409
    %544 = vmatprep.subr.bf16.mxu0 0
    %545 = vmatpush1.bf16.msra.mxu0 %v410
    %546 = vmatprep.subr.bf16.mxu0 0
    %547 = vmatpush1.bf16.msra.mxu0 %v411
    %548 = vmatprep.subr.bf16.mxu0 0
    %549 = vmatpush1.bf16.msra.mxu0 %v412
    %550 = vmatprep.subr.bf16.mxu0 0
    %551 = vmatpush1.bf16.msra.mxu0 %v413
    %552 = vmatprep.subr.bf16.mxu0 0
    %553 = vmatpush1.bf16.msra.mxu0 %v414
    %554 = vmatprep.subr.bf16.mxu0 0
    %555 = vmatpush1.bf16.msra.mxu0 %v415
    %556 = vmatprep.subr.bf16.mxu0 0
    %557 = vmatpush1.bf16.msra.mxu0 %v416
    %558 = vmatprep.subr.bf16.mxu0 0
    %559 = vmatpush1.bf16.msra.mxu0 %v417
    %560 = vmatprep.subr.bf16.mxu0 0
    %561 = vmatpush1.bf16.msra.mxu0 %v418
    %562 = vmatprep.subr.bf16.mxu0 0
    %563 = vmatpush1.bf16.msra.mxu0 %v419
    %564 = vmatprep.subr.bf16.mxu0 0
    %565 = vmatpush1.bf16.msra.mxu0 %v420
    %566 = vmatprep.mubr.bf16.mxu0 %v176
    %567 = vmatmul.mubr.bf16.gmra.mrb[0].mxu0 %v175
    %v568 = vpop.f32.mrb[0].mxu0
    %v569 = vadd.f32 %v520, %v568
    %v570 = vpop.f32.mrb[0].mxu0
    %v571 = vpop.f32.mrb[0].mxu0
    %v572 = vadd.f32 %v523, %v571
    %v573 = vpop.f32.mrb[0].mxu0
    %574 = vmatprep.mubr.bf16.mxu0 %v182
    %575 = vmatmul.mubr.bf16.gmra.mrb[0].mxu0 %v181
    %v576 = vpop.f32.mrb[0].mxu0
    %v577 = vadd.f32 %v528, %v576
    %v578 = vpop.f32.mrb[0].mxu0
    %v579 = vpop.f32.mrb[0].mxu0
    %v580 = vadd.f32 %v531, %v579
    %v581 = vpop.f32.mrb[0].mxu0
    %582 = vdwg.mxu0
    %583 = vmatprep.subr.bf16.mxu0 0
    %584 = vmatpush1.bf16.msra.mxu0 %v421
    %585 = vmatprep.subr.bf16.mxu0 0
    %586 = vmatpush1.bf16.msra.mxu0 %v422
    %587 = vmatprep.subr.bf16.mxu0 0
    %588 = vmatpush1.bf16.msra.mxu0 %v423
    %589 = vmatprep.subr.bf16.mxu0 0
    %590 = vmatpush1.bf16.msra.mxu0 %v424
    %591 = vmatprep.subr.bf16.mxu0 0
    %592 = vmatpush1.bf16.msra.mxu0 %v425
    %593 = vmatprep.subr.bf16.mxu0 0
    %594 = vmatpush1.bf16.msra.mxu0 %v426
    %595 = vmatprep.subr.bf16.mxu0 0
    %596 = vmatpush1.bf16.msra.mxu0 %v427
    %597 = vmatprep.subr.bf16.mxu0 0
    %598 = vmatpush1.bf16.msra.mxu0 %v428
    %599 = vmatprep.subr.bf16.mxu0 0
    %600 = vmatpush1.bf16.msra.mxu0 %v429
    %601 = vmatprep.subr.bf16.mxu0 0
    %602 = vmatpush1.bf16.msra.mxu0 %v430
    %603 = vmatprep.subr.bf16.mxu0 0
    %604 = vmatpush1.bf16.msra.mxu0 %v431
    %605 = vmatprep.subr.bf16.mxu0 0
    %606 = vmatpush1.bf16.msra.mxu0 %v432
    %607 = vmatprep.subr.bf16.mxu0 0
    %608 = vmatpush1.bf16.msra.mxu0 %v433
    %609 = vmatprep.subr.bf16.mxu0 0
    %610 = vmatpush1.bf16.msra.mxu0 %v434
    %611 = vmatprep.subr.bf16.mxu0 0
    %612 = vmatpush1.bf16.msra.mxu0 %v435
    %613 = vmatprep.subr.bf16.mxu0 0
    %614 = vmatpush1.bf16.msra.mxu0 %v436
    %615 = vmatprep.mubr.bf16.mxu0 %v178
    %616 = vmatmul.mubr.bf16.gmra.mrb[0].mxu0 %v177
    %v617 = vpop.f32.mrb[0].mxu0
    %v618 = vadd.f32 %v569, %v617
    %v619 = vpop.f32.mrb[0].mxu0
    %v620 = vpop.f32.mrb[0].mxu0
    %v621 = vadd.f32 %v572, %v620
    %v622 = vpop.f32.mrb[0].mxu0
    %623 = vmatprep.mubr.bf16.mxu0 %v184
    %624 = vmatmul.mubr.bf16.gmra.mrb[0].mxu0 %v183
    %v625 = vpop.f32.mrb[0].mxu0
    %v626 = vadd.f32 %v577, %v625
    %v627 = vpop.f32.mrb[0].mxu0
    %v628 = vpop.f32.mrb[0].mxu0
    %v629 = vadd.f32 %v580, %v628
    %v630 = vpop.f32.mrb[0].mxu0
    %631 = vdwg.mxu0
    %v636 = vcombine.high %v618, %v618
    %v637 = vcombine.high %v621, %v621
    %v638 = vcombine.high %v626, %v626
    %v639 = vcombine.high %v629, %v629
    %v644 = vlaneseq
    %v645 = vshrl.u32 %v644, 7
    %v646 = vadd.s32 %v645, 8
    %v647 = vld [vmem:[%s4] sm:$0xff]
    %v648 = vld [vmem:[%s4 + $0x8] sm:$0xff]
    %vm649 = vcmp.eq.s32.totalorder %v645, 0
    %vm650 = vcmp.eq.s32.totalorder %v646, 0
    %v651 = vld [vmem:[%s3] sm:$0x1]
    %v652 = vsel %vm649, 1, 0
    %v653 = vsel %vm650, 1, 0
    %vm654 = vcmp.eq.s32.totalorder %v652, 1
    %vm655 = vcmp.eq.s32.totalorder %v653, 1
    %v657 = vlaneseq
    %v658 = vshrl.u32 %v657, 7
    %v659 = vsub.s32 0, %v658
    %v660 = vrot.slane %v651, %v659
    %v662 = vsel %vm654, %v660, 0.0
    %v663 = vsel %vm655, %v660, 0.0
    %v664 = vadd.f32 %v647, %v662
    %v665 = vadd.f32 %v648, %v663
    %vm666 = vcmask 261120
    %667 = vst.msk [vmem:[#allocation2] sm:$0xff] %vm666, %v664
    %668 = vst.msk [vmem:[#allocation2 + $0x8] sm:$0xff] %vm666, %v665
    %669 = vst.msk [vmem:[#allocation2 + $0x10] sm:$0xff] %vm666, %v664
    %670 = vst.msk [vmem:[#allocation2 + $0x18] sm:$0xff] %vm666, %v665
    %671 = vst.msk [vmem:[#allocation2 + $0x20] sm:$0xff] %vm666, %v664
    %672 = vst.msk [vmem:[#allocation2 + $0x28] sm:$0xff] %vm666, %v665
    %673 = vst.msk [vmem:[#allocation2 + $0x30] sm:$0xff] %vm666, %v664
    %674 = vst.msk [vmem:[#allocation2 + $0x38] sm:$0xff] %vm666, %v665
    %675 = vst.msk [vmem:[#allocation2 + $0x40] sm:$0xff] %vm666, %v664
    %676 = vst.msk [vmem:[#allocation2 + $0x48] sm:$0xff] %vm666, %v665
    %677 = vst.msk [vmem:[#allocation2 + $0x50] sm:$0xff] %vm666, %v664
    %678 = vst.msk [vmem:[#allocation2 + $0x58] sm:$0xff] %vm666, %v665
    %679 = vst.msk [vmem:[#allocation2 + $0x60] sm:$0xff] %vm666, %v664
    %680 = vst.msk [vmem:[#allocation2 + $0x68] sm:$0xff] %vm666, %v665
    %681 = vst.msk [vmem:[#allocation2 + $0x70] sm:$0xff] %vm666, %v664
    %682 = vst.msk [vmem:[#allocation2 + $0x78] sm:$0xff] %vm666, %v665
    %v683 = vld [vmem:[%s4 + $0x1] sm:$0xf]
    %v684 = vadd.f32 %v618, %v683
    %v685 = vadd.f32 %v636, %v683
    %v686 = vadd.f32 %v621, %v683
    %v687 = vadd.f32 %v637, %v683
    %v688 = vadd.f32 %v626, %v683
    %v689 = vadd.f32 %v638, %v683
    %v690 = vadd.f32 %v629, %v683
    %v691 = vadd.f32 %v639, %v683
    %vm692 = vcmask 257024
    %693 = vst.msk [vmem:[#allocation2 + $0x1] sm:$0xf] %vm692, %v684
    %694 = vst.msk [vmem:[#allocation2 + $0x11] sm:$0xf] %vm692, %v685
    %695 = vst.msk [vmem:[#allocation2 + $0x21] sm:$0xf] %vm692, %v686
    %696 = vst.msk [vmem:[#allocation2 + $0x31] sm:$0xf] %vm692, %v687
    %697 = vst.msk [vmem:[#allocation2 + $0x41] sm:$0xf] %vm692, %v688
    %698 = vst.msk [vmem:[#allocation2 + $0x51] sm:$0xf] %vm692, %v689
    %699 = vst.msk [vmem:[#allocation2 + $0x61] sm:$0xf] %vm692, %v690
    %700 = vst.msk [vmem:[#allocation2 + $0x71] sm:$0xf] %vm692, %v691
    // Predicated region
    $region22: #{tpu_custom_call.1} parent=1 // pred_check
      _
    $region23: #{tpu_custom_call.1} parent=1 // pred_check_branch
      %702 = sbr.rel (0) target = $region25
    $region24: #{tpu_custom_call.1} parent=1 // pred_region
      %s704 = ssub.s32 2048, 2048
      %705 = vsyncadd [#allocation3], %s704
      %s706 = sshll.u32 [#allocation2], 4
      %s707 = int_to_ptr.vmem [resolvable:$true] %s706
      %712 = dma.vmem_to_hbm [thread:$0]  %s707, 2048, %s5, [#allocation3], 128, 128, 8
    $region25: #{tpu_custom_call.1} parent=1 // pred_fallthru
      _
    // Predicated region
    $region26: #{tpu_custom_call.1} parent=1 // pred_check
      _
    $region27: #{tpu_custom_call.1} parent=1 // pred_check_branch
      %714 = sbr.rel (0) target = $region29
    $region28: #{tpu_custom_call.1} parent=1 // pred_region
      %715 = dma.done [#allocation3], 2048
    $region29: #{tpu_custom_call.1} parent=1 // pred_fallthru
      _
    %716 = vsyncpa [#allocation3], 1

</llo_original>
